<compile_context>
chip_gen: v5e
topology: v5e:2x2
jax: 0.10.0
libtpu: 0.0.40
codegen_flags: <defaults>
</compile_context>

<pallas_src>
import jax
import jax.numpy as jnp
from jax.experimental import pallas as pl
from jax.experimental.pallas import tpu as pltpu


def _maskblock_kernel(x_ref, *refs):
    """refs = (w0T, b0, w1T, b1, ..., wlastT, blast, o_ref).

    x_ref:  (1, C, tile_hw)         activations, spatial on lanes
    wiT:    (d_out, d_in)           pre-transposed weights (full block)
    bi:     (d_out, 1)              bias, broadcasts over the lane axis
    o_ref:  (1, 1, tile_hw)         sigmoid output, lane-dense
    """
    o_ref = refs[-1]
    params = refs[:-1]
    n_layers = len(params) // 2

    h = x_ref[0].astype(jnp.float32)                      # (C, tile_hw)
    for i in range(n_layers):
        wt = params[2 * i][...].astype(jnp.float32)       # (d_out, d_in)
        b = params[2 * i + 1][...].astype(jnp.float32)    # (d_out, 1)
        if i < n_layers - 1:
            h = jnp.dot(wt, h, preferred_element_type=jnp.float32) + b
            h = jnp.maximum(h, 0.0)                       # ReLU on hidden fcs
        else:
            if wt.shape[0] == 1:
                # last_fc with d_out == 1: VPU multiply + sublane reduce
                # (avoids pushing a whole MXU pass for a single output row).
                h = jnp.sum(wt.reshape(-1, 1) * h, axis=0, keepdims=True) + b
            else:
                h = jnp.dot(wt, h, preferred_element_type=jnp.float32) + b
            h = jax.nn.sigmoid(h)                         # sigmoid on last_fc
    o_ref[0] = h.astype(o_ref.dtype)


def mask_block_forward(x_nchw, weights, biases, *, tile_hw=2048):
    """weights[i]: (d_in, d_out) (already transposed vs. torch), biases[i]: (d_out,).

    Returns (N, H, W, 1), matching MaskBlock.forward semantics.
    """
    N, C, H, W = x_nchw.shape
    HW = H * W
    dtype = x_nchw.dtype

    # Spatial positions on the lane (last) axis; no host-side transpose of x.
    x = x_nchw.reshape(N, C, HW)

    # Lane tile: multiple of 128, no larger than the 128-rounded spatial size.
    tile = min(int(tile_hw), pl.cdiv(HW, 128) * 128)
    hw_pad = pl.cdiv(HW, tile) * tile
    if hw_pad != HW:
        x = jnp.pad(x, ((0, 0), (0, 0), (0, hw_pad - HW)))

    grid = (N, hw_pad // tile)

    in_specs = [pl.BlockSpec((1, C, tile), lambda n, j: (n, 0, j))]
    args = [x]
    for w, b in zip(weights, biases):
        wt = jnp.transpose(w)            # (d_out, d_in): transposed orientation
        bt = b.reshape(-1, 1)            # (d_out, 1): broadcasts over lanes
        in_specs.append(pl.BlockSpec(wt.shape, lambda n, j: (0, 0)))
        in_specs.append(pl.BlockSpec(bt.shape, lambda n, j: (0, 0)))
        args.append(wt)
        args.append(bt)

    out_dim = weights[-1].shape[-1]      # == 1 for MaskBlock
    out = pl.pallas_call(
        _maskblock_kernel,
        out_shape=jax.ShapeDtypeStruct((N, out_dim, hw_pad), dtype),
        grid_spec=pltpu.PrefetchScalarGridSpec(
            num_scalar_prefetch=0,
            grid=grid,
            in_specs=in_specs,
            out_specs=pl.BlockSpec((1, out_dim, tile), lambda n, j: (n, 0, j)),
        ),
        compiler_params=pltpu.CompilerParams(
            dimension_semantics=("parallel", "parallel")),
    )(*args)

    out = out[:, :, :HW]                                   # drop lane padding
    return jnp.transpose(out, (0, 2, 1)).reshape(N, H, W, out_dim)


def _reference_forward(x_nchw, weights, biases):
    out = jnp.transpose(x_nchw, (0, 2, 3, 1))
    n = len(weights)
    for i, (w, b) in enumerate(zip(weights, biases)):
        out = out @ w + b
        out = jnp.maximum(out, 0.0) if i < n - 1 else jax.nn.sigmoid(out)
    return out


if __name__ == "__main__":
    key = jax.random.PRNGKey(0)

    # Small shapes consistent with the module (in_dim=C, fc_dims hidden MLP, last_fc -> 1).
    N, C, H, W = 2, 32, 16, 16
    fc_dims = [16, 8]
    dims = [C] + fc_dims                      # mirrors fc_dims.insert(0, in_dim)
    layer_dims = list(zip(dims[:-1], dims[1:])) + [(dims[-1], 1)]  # fcs + last_fc

    keys = jax.random.split(key, 2 * len(layer_dims) + 2)
    weights, biases = [], []
    for li, (din, dout) in enumerate(layer_dims):
        bound = 1.0 / (din ** 0.5)            # nn.Linear default init range
        w = jax.random.uniform(keys[2 * li], (din, dout), jnp.float32, -bound, bound)
        b = jax.random.uniform(keys[2 * li + 1], (dout,), jnp.float32, -bound, bound)
        weights.append(w)
        biases.append(b)

    x = jax.random.normal(keys[-2], (N, C, H, W), jnp.float32)

    out = mask_block_forward(x, weights, biases)
    jax.block_until_ready(out)
    ref = _reference_forward(x, weights, biases)
    assert out.shape == (N, H, W, 1), out.shape
    assert jnp.allclose(out, ref, atol=1e-5, rtol=1e-5), "mismatch vs pure-JAX reference"

    # Ragged-spatial path (H*W not a multiple of 128): exercises the padded tail.
    x2 = jax.random.normal(keys[-1], (N, C, 5, 6), jnp.float32)
    out2 = mask_block_forward(x2, weights, biases)
    jax.block_until_ready(out2)
    ref2 = _reference_forward(x2, weights, biases)
    assert out2.shape == (N, 5, 6, 1), out2.shape
    assert jnp.allclose(out2, ref2, atol=1e-5, rtol=1e-5), "mismatch on padded-tail path"

    print("KERNEL_OK")
</pallas_src>

<mosaic_0001>
module attributes {stable_mosaic.version = 11 : i64} {
  func.func @_maskblock_kernel(%arg0: i32, %arg1: i32, %arg2: memref<1x32x256xf32, #tpu.memory_space<vmem>>, %arg3: memref<16x32xf32, #tpu.memory_space<vmem>>, %arg4: memref<16x1xf32, #tpu.memory_space<vmem>>, %arg5: memref<8x16xf32, #tpu.memory_space<vmem>>, %arg6: memref<8x1xf32, #tpu.memory_space<vmem>>, %arg7: memref<1x8xf32, #tpu.memory_space<vmem>>, %arg8: memref<1x1xf32, #tpu.memory_space<vmem>>, %arg9: memref<1x1x256xf32, #tpu.memory_space<vmem>>) attributes {dimension_semantics = [#tpu.dimension_semantics<parallel>, #tpu.dimension_semantics<parallel>], iteration_bounds = array<i64: 2, 1>, scalar_prefetch = 0 : i64, scratch_operands = 0 : i64, tpu.core_type = #tpu.core_type<tc>, window_params = [{transform_indices = @transform_0, window_bounds = array<i64: 1, 32, 256>}, {pipeline_mode = #tpu.pipeline_mode<synchronous>, transform_indices = @transform_1, window_bounds = array<i64: 16, 32>}, {pipeline_mode = #tpu.pipeline_mode<synchronous>, transform_indices = @transform_2, window_bounds = array<i64: 16, 1>}, {pipeline_mode = #tpu.pipeline_mode<synchronous>, transform_indices = @transform_3, window_bounds = array<i64: 8, 16>}, {pipeline_mode = #tpu.pipeline_mode<synchronous>, transform_indices = @transform_4, window_bounds = array<i64: 8, 1>}, {pipeline_mode = #tpu.pipeline_mode<synchronous>, transform_indices = @transform_5, window_bounds = array<i64: 1, 8>}, {pipeline_mode = #tpu.pipeline_mode<synchronous>, transform_indices = @transform_6, window_bounds = array<i64: 1, 1>}, {transform_indices = @transform_7, window_bounds = array<i64: 1, 1, 256>}]} {
    %c0 = arith.constant 0 : index
    %c0_0 = arith.constant 0 : index
    %c0_1 = arith.constant 0 : index
    %0 = vector.load %arg2[%c0, %c0_0, %c0_1] : memref<1x32x256xf32, #tpu.memory_space<vmem>>, vector<1x32x256xf32>
    %1 = vector.shape_cast %0 : vector<1x32x256xf32> to vector<32x256xf32>
    %c0_2 = arith.constant 0 : index
    %c0_3 = arith.constant 0 : index
    %2 = vector.load %arg3[%c0_2, %c0_3] : memref<16x32xf32, #tpu.memory_space<vmem>>, vector<16x32xf32>
    %c0_4 = arith.constant 0 : index
    %c0_5 = arith.constant 0 : index
    %3 = vector.load %arg4[%c0_4, %c0_5] : memref<16x1xf32, #tpu.memory_space<vmem>>, vector<16x1xf32>
    %cst = arith.constant dense<0.000000e+00> : vector<16x256xf32>
    %4 = tpu.matmul %2, %1, %cst {dimension_numbers = #tpu.dot_dimension_numbers<[1], [0], [0], [1], [0, 0, 1, 1], [], []>} : vector<16x32xf32>, vector<32x256xf32>, vector<16x256xf32> -> vector<16x256xf32>
    %5 = vector.broadcast %3 : vector<16x1xf32> to vector<16x256xf32>
    %6 = arith.addf %4, %5 : vector<16x256xf32>
    %cst_6 = arith.constant 0.000000e+00 : f32
    %7 = vector.broadcast %cst_6 : f32 to vector<16x256xf32>
    %8 = arith.maximumf %6, %7 : vector<16x256xf32>
    %c0_7 = arith.constant 0 : index
    %c0_8 = arith.constant 0 : index
    %9 = vector.load %arg5[%c0_7, %c0_8] : memref<8x16xf32, #tpu.memory_space<vmem>>, vector<8x16xf32>
    %c0_9 = arith.constant 0 : index
    %c0_10 = arith.constant 0 : index
    %10 = vector.load %arg6[%c0_9, %c0_10] : memref<8x1xf32, #tpu.memory_space<vmem>>, vector<8x1xf32>
    %cst_11 = arith.constant dense<0.000000e+00> : vector<8x256xf32>
    %11 = tpu.matmul %9, %8, %cst_11 {dimension_numbers = #tpu.dot_dimension_numbers<[1], [0], [0], [1], [0, 0, 1, 1], [], []>} : vector<8x16xf32>, vector<16x256xf32>, vector<8x256xf32> -> vector<8x256xf32>
    %12 = vector.broadcast %10 : vector<8x1xf32> to vector<8x256xf32>
    %13 = arith.addf %11, %12 : vector<8x256xf32>
    %cst_12 = arith.constant 0.000000e+00 : f32
    %14 = vector.broadcast %cst_12 : f32 to vector<8x256xf32>
    %15 = arith.maximumf %13, %14 : vector<8x256xf32>
    %c0_13 = arith.constant 0 : index
    %c0_14 = arith.constant 0 : index
    %16 = vector.load %arg7[%c0_13, %c0_14] : memref<1x8xf32, #tpu.memory_space<vmem>>, vector<1x8xf32>
    %c0_15 = arith.constant 0 : index
    %c0_16 = arith.constant 0 : index
    %17 = vector.load %arg8[%c0_15, %c0_16] : memref<1x1xf32, #tpu.memory_space<vmem>>, vector<1x1xf32>
    %18 = vector.shape_cast %16 : vector<1x8xf32> to vector<8x1xf32>
    %19 = vector.broadcast %18 : vector<8x1xf32> to vector<8x256xf32>
    %20 = arith.mulf %19, %15 : vector<8x256xf32>
    %cst_17 = arith.constant dense<0.000000e+00> : vector<256xf32>
    %21 = vector.multi_reduction <add>, %20, %cst_17 [0] : vector<8x256xf32> to vector<256xf32>
    %22 = vector.shape_cast %21 : vector<256xf32> to vector<1x256xf32>
    %23 = vector.broadcast %17 : vector<1x1xf32> to vector<1x256xf32>
    %24 = arith.addf %22, %23 : vector<1x256xf32>
    %25 = arith.negf %24 : vector<1x256xf32>
    %26 = math.exp %25 : vector<1x256xf32>
    %cst_18 = arith.constant 1.000000e+00 : f32
    %27 = vector.broadcast %cst_18 : f32 to vector<1x256xf32>
    %28 = arith.addf %27, %26 : vector<1x256xf32>
    %29 = arith.divf %27, %28 : vector<1x256xf32>
    %c0_19 = arith.constant 0 : index
    %c0_20 = arith.constant 0 : index
    %c0_21 = arith.constant 0 : index
    %30 = vector.load %arg9[%c0_19, %c0_20, %c0_21] : memref<1x1x256xf32, #tpu.memory_space<vmem>>, vector<1x1x256xf32>
    %31 = vector.shape_cast %30 : vector<1x1x256xf32> to vector<1x256xf32>
    %32 = vector.shape_cast %29 : vector<1x256xf32> to vector<1x1x256xf32>
    tpu.vector_store %arg9[%c0_19, %c0_20, %c0_21], %32 {strides = array<i32>} : memref<1x1x256xf32, #tpu.memory_space<vmem>>, vector<1x1x256xf32>,
    return
  }
  func.func @transform_0(%arg0: i32, %arg1: i32) -> (i32, i32, i32) {
    %c0_i32 = arith.constant 0 : i32
    %c0_i32_0 = arith.constant 0 : i32
    return %arg0, %c0_i32, %arg1 : i32, i32, i32
  }
  func.func @transform_1(%arg0: i32, %arg1: i32) -> (i32, i32) {
    %c0_i32 = arith.constant 0 : i32
    %c0_i32_0 = arith.constant 0 : i32
    %c0_i32_1 = arith.constant 0 : i32
    return %c0_i32, %c0_i32_0 : i32, i32
  }
  func.func @transform_2(%arg0: i32, %arg1: i32) -> (i32, i32) {
    %c0_i32 = arith.constant 0 : i32
    %c0_i32_0 = arith.constant 0 : i32
    %c0_i32_1 = arith.constant 0 : i32
    return %c0_i32, %c0_i32_0 : i32, i32
  }
  func.func @transform_3(%arg0: i32, %arg1: i32) -> (i32, i32) {
    %c0_i32 = arith.constant 0 : i32
    %c0_i32_0 = arith.constant 0 : i32
    %c0_i32_1 = arith.constant 0 : i32
    return %c0_i32, %c0_i32_0 : i32, i32
  }
  func.func @transform_4(%arg0: i32, %arg1: i32) -> (i32, i32) {
    %c0_i32 = arith.constant 0 : i32
    %c0_i32_0 = arith.constant 0 : i32
    %c0_i32_1 = arith.constant 0 : i32
    return %c0_i32, %c0_i32_0 : i32, i32
  }
  func.func @transform_5(%arg0: i32, %arg1: i32) -> (i32, i32) {
    %c0_i32 = arith.constant 0 : i32
    %c0_i32_0 = arith.constant 0 : i32
    %c0_i32_1 = arith.constant 0 : i32
    return %c0_i32, %c0_i32_0 : i32, i32
  }
  func.func @transform_6(%arg0: i32, %arg1: i32) -> (i32, i32) {
    %c0_i32 = arith.constant 0 : i32
    %c0_i32_0 = arith.constant 0 : i32
    %c0_i32_1 = arith.constant 0 : i32
    return %c0_i32, %c0_i32_0 : i32, i32
  }
  func.func @transform_7(%arg0: i32, %arg1: i32) -> (i32, i32, i32) {
    %c0_i32 = arith.constant 0 : i32
    %c0_i32_0 = arith.constant 0 : i32
    return %arg0, %c0_i32, %arg1 : i32, i32, i32
  }
}

</mosaic_0001>

<llo_original>
// kernel: tpu_custom_call.1
$region0: #{tpu_custom_call.1}
  #allocation0 [shape = 'u32[]', space=smem, size = 0x4, offset = 0x4, fixed_abs, tag = 'smem constant byte address 0x4 - core index']
  #allocation1 [shape = 'u32[72,128]{1,0:T(1,128)}', space=vmem, size = 0x9000, scoped, tag = 'internal scratch']
  #allocation2 [shape = 'f32[1,1]{1,0:T(1,128)S(1)}', space=vmem, size = 0x200, scoped, tag = 'scoped memory for tpu_custom_call.1']
  %s0 = inlined_call_operand.hbm [shape: f32[2,32,256], index: 0, kind: input, shape index: {}]
  %s1 = inlined_call_operand.vmem [shape: f32[16,32], index: 1, kind: input, shape index: {}]
  %s2 = inlined_call_operand.vmem [shape: f32[16,1], index: 2, kind: input, shape index: {}]
  %s3 = inlined_call_operand.vmem [shape: f32[8,16], index: 3, kind: input, shape index: {}]
  %s4 = inlined_call_operand.vmem [shape: f32[8,1], index: 4, kind: input, shape index: {}]
  %s5 = inlined_call_operand.vmem [shape: f32[1,8], index: 5, kind: input, shape index: {}]
  %s6 = inlined_call_operand.<no memory space> [shape: f32[1,1], index: 6, kind: input, shape index: {}]
  %s7 = inlined_call_operand.hbm [shape: f32[2,1,256], index: 7, kind: output, shape index: {}]
  %s8 = sld [smem:[#allocation0]]
  $region65: #{tpu_custom_call.1} parent=0
    _
  %s10 = ssub.s32 1, %s8
  %s11 = scalar_select 0, %s10, %s8
  %v12 = vstv %s6
  %13 = vst [vmem:[#allocation2] sm:$0x1] %v12
  $region1: #{tpu_custom_call.1} parent=0
    #allocation3 [shape = 'u8[65536]{0}', space=vmem, size = 0x10000, scoped, tag = 'input window, operand 0']
    #allocation4 [shape = 's32[2]{0}', space=sflag, size = 0x8, scoped, tag = 'scoped memory for tpu_custom_call.1']
    #allocation5 [shape = 's32[2]{0}', space=sflag, size = 0x8, scoped, tag = 'scoped memory for tpu_custom_call.1']
    #allocation6 [shape = 'u8[2048]{0}', space=vmem, size = 0x800, scoped, tag = 'output window, operand 0']
    %14 = vsyncpa [#allocation4], 0
    %s15 = scalar_lea.sflag [#allocation4], 1
    %16 = vsyncpa %s15, 0
    %17 = vsyncpa [#allocation5], 0
    %s18 = scalar_lea.sflag [#allocation5], 1
    %19 = vsyncpa %s18, 0
    loop: start=0, step=1, limit=4
    $region2: #{tpu_custom_call.1} parent=1 // loop_pre_header
      _
    $region3: #{tpu_custom_call.1} parent=1 // loop_header
      %s21 = sphi 0, %s25
      %p22 = scmp.ge.s32.totalorder %s21, 4
      %s28 = sphi 0, %s40
      %s29 = sphi 0, %s36
      %s30 = sphi 0, %s28
      %s31 = sphi 0, %s29
      %s32 = sphi 0, %s30
      %s33 = sphi 0, %s31
      %s45 = sphi 0, %s47
      %s48 = sphi 0, %s45
      %s49 = sphi 0, %s48
      %s65 = sphi 0, %s49
      %s69 = sphi 0, %s69
      %s71 = sphi 0, %s69
      %s72 = sphi 0, %s71
      %s86 = sphi 0, %s72
      %s90 = sphi 0, %s90
      %s92 = sphi 0, %s90
      %s93 = sphi 0, %s92
      %s107 = sphi 0, %s93
      %s111 = sphi 0, %s111
      %s113 = sphi 0, %s111
      %s114 = sphi 0, %s113
      %s128 = sphi 0, %s114
      %s132 = sphi 0, %s132
      %s134 = sphi 0, %s132
      %s135 = sphi 0, %s134
      %s149 = sphi 0, %s135
      %s153 = sphi 0, %s153
      %s155 = sphi 0, %s153
      %s156 = sphi 0, %s155
      %s170 = sphi 0, %s156
      %s174 = sphi 0, %s174
      %s176 = sphi 0, %s174
      %s177 = sphi 0, %s176
      %s191 = sphi 0, %s177
      %s199 = sphi 0, %s201
      %s202 = sphi 0, %s199
      %s203 = sphi 0, %s202
      %s219 = sphi 0, %s203
    $region4: #{tpu_custom_call.1} parent=1 // loop_header_branch
      %24 = sbr.rel (%p22) target = $region8
    $region5: #{tpu_custom_call.1} parent=1 // loop_body
      %s26 = ssub.s32 %s21, 1
      %s27 = ssub.s32 %s21, 2
      %s34 = sadd.s32 1, %s29
      %p35 = scmp.ge.s32.totalorder %s34, 1
      %s36 = scalar_select %p35, 0, %s34
      %s37 = sadd.s32 1, %s28
      %s38 = scalar_select %p35, %s37, %s28
      %p39 = scmp.ge.s32.totalorder %s38, 2
      %s40 = scalar_select %p39, 0, %s38
      %s41 = ssub.s32 %s28, %s40
      %s42 = ssub.s32 %s29, %s36
      %s43 = sor.u32 %s41, %s42
      %p44 = scmp.eq.s32.totalorder %s43, 0
      %s46 = sadd.s32 %s45, 1
      %s47 = scalar_select %p44, %s45, %s46
      %p50 = pneg %p44
      %p51 = scmp.eq.s32.totalorder %s21, 1
      %p52 = por %p50, %p51
      %p53 = scmp.ne.s32.totalorder %s45, %s48
      %p54 = scmp.eq.s32.totalorder %s21, 0
      %p55 = por %p53, %p54
      %p56 = scmp.ne.s32.totalorder %s45, %s48
      %p57 = scmp.eq.s32.totalorder %s26, 1
      %p58 = por %p56, %p57
      %p59 = scmp.ne.s32.totalorder %s48, %s49
      %p60 = scmp.eq.s32.totalorder %s26, 0
      %p61 = por %p59, %p60
      %p62 = scmp.ne.s32.totalorder %s48, %s49
      %p63 = scmp.eq.s32.totalorder %s27, 1
      %p64 = por %p62, %p63
      %p66 = scmp.ne.s32.totalorder %s49, %s65
      %p67 = scmp.eq.s32.totalorder %s27, 0
      %p68 = por %p66, %p67
      %s70 = sadd.s32 %s69, 1
      %p73 = scmp.eq.s32.totalorder %s21, 1
      %p74 = scmp.ne.s32.totalorder %s69, %s71
      %p75 = scmp.eq.s32.totalorder %s21, 0
      %p76 = por %p74, %p75
      %p77 = scmp.ne.s32.totalorder %s69, %s71
      %p78 = scmp.eq.s32.totalorder %s26, 1
      %p79 = por %p77, %p78
      %p80 = scmp.ne.s32.totalorder %s71, %s72
      %p81 = scmp.eq.s32.totalorder %s26, 0
      %p82 = por %p80, %p81
      %p83 = scmp.ne.s32.totalorder %s71, %s72
      %p84 = scmp.eq.s32.totalorder %s27, 1
      %p85 = por %p83, %p84
      %p87 = scmp.ne.s32.totalorder %s72, %s86
      %p88 = scmp.eq.s32.totalorder %s27, 0
      %p89 = por %p87, %p88
      %s91 = sadd.s32 %s90, 1
      %p94 = scmp.eq.s32.totalorder %s21, 1
      %p95 = scmp.ne.s32.totalorder %s90, %s92
      %p96 = scmp.eq.s32.totalorder %s21, 0
      %p97 = por %p95, %p96
      %p98 = scmp.ne.s32.totalorder %s90, %s92
      %p99 = scmp.eq.s32.totalorder %s26, 1
      %p100 = por %p98, %p99
      %p101 = scmp.ne.s32.totalorder %s92, %s93
      %p102 = scmp.eq.s32.totalorder %s26, 0
      %p103 = por %p101, %p102
      %p104 = scmp.ne.s32.totalorder %s92, %s93
      %p105 = scmp.eq.s32.totalorder %s27, 1
      %p106 = por %p104, %p105
      %p108 = scmp.ne.s32.totalorder %s93, %s107
      %p109 = scmp.eq.s32.totalorder %s27, 0
      %p110 = por %p108, %p109
      %s112 = sadd.s32 %s111, 1
      %p115 = scmp.eq.s32.totalorder %s21, 1
      %p116 = scmp.ne.s32.totalorder %s111, %s113
      %p117 = scmp.eq.s32.totalorder %s21, 0
      %p118 = por %p116, %p117
      %p119 = scmp.ne.s32.totalorder %s111, %s113
      %p120 = scmp.eq.s32.totalorder %s26, 1
      %p121 = por %p119, %p120
      %p122 = scmp.ne.s32.totalorder %s113, %s114
      %p123 = scmp.eq.s32.totalorder %s26, 0
      %p124 = por %p122, %p123
      %p125 = scmp.ne.s32.totalorder %s113, %s114
      %p126 = scmp.eq.s32.totalorder %s27, 1
      %p127 = por %p125, %p126
      %p129 = scmp.ne.s32.totalorder %s114, %s128
      %p130 = scmp.eq.s32.totalorder %s27, 0
      %p131 = por %p129, %p130
      %s133 = sadd.s32 %s132, 1
      %p136 = scmp.eq.s32.totalorder %s21, 1
      %p137 = scmp.ne.s32.totalorder %s132, %s134
      %p138 = scmp.eq.s32.totalorder %s21, 0
      %p139 = por %p137, %p138
      %p140 = scmp.ne.s32.totalorder %s132, %s134
      %p141 = scmp.eq.s32.totalorder %s26, 1
      %p142 = por %p140, %p141
      %p143 = scmp.ne.s32.totalorder %s134, %s135
      %p144 = scmp.eq.s32.totalorder %s26, 0
      %p145 = por %p143, %p144
      %p146 = scmp.ne.s32.totalorder %s134, %s135
      %p147 = scmp.eq.s32.totalorder %s27, 1
      %p148 = por %p146, %p147
      %p150 = scmp.ne.s32.totalorder %s135, %s149
      %p151 = scmp.eq.s32.totalorder %s27, 0
      %p152 = por %p150, %p151
      %s154 = sadd.s32 %s153, 1
      %p157 = scmp.eq.s32.totalorder %s21, 1
      %p158 = scmp.ne.s32.totalorder %s153, %s155
      %p159 = scmp.eq.s32.totalorder %s21, 0
      %p160 = por %p158, %p159
      %p161 = scmp.ne.s32.totalorder %s153, %s155
      %p162 = scmp.eq.s32.totalorder %s26, 1
      %p163 = por %p161, %p162
      %p164 = scmp.ne.s32.totalorder %s155, %s156
      %p165 = scmp.eq.s32.totalorder %s26, 0
      %p166 = por %p164, %p165
      %p167 = scmp.ne.s32.totalorder %s155, %s156
      %p168 = scmp.eq.s32.totalorder %s27, 1
      %p169 = por %p167, %p168
      %p171 = scmp.ne.s32.totalorder %s156, %s170
      %p172 = scmp.eq.s32.totalorder %s27, 0
      %p173 = por %p171, %p172
      %s175 = sadd.s32 %s174, 1
      %p178 = scmp.eq.s32.totalorder %s21, 1
      %p179 = scmp.ne.s32.totalorder %s174, %s176
      %p180 = scmp.eq.s32.totalorder %s21, 0
      %p181 = por %p179, %p180
      %p182 = scmp.ne.s32.totalorder %s174, %s176
      %p183 = scmp.eq.s32.totalorder %s26, 1
      %p184 = por %p182, %p183
      %p185 = scmp.ne.s32.totalorder %s176, %s177
      %p186 = scmp.eq.s32.totalorder %s26, 0
      %p187 = por %p185, %p186
      %p188 = scmp.ne.s32.totalorder %s176, %s177
      %p189 = scmp.eq.s32.totalorder %s27, 1
      %p190 = por %p188, %p189
      %p192 = scmp.ne.s32.totalorder %s177, %s191
      %p193 = scmp.eq.s32.totalorder %s27, 0
      %p194 = por %p192, %p193
      %s195 = ssub.s32 %s28, %s40
      %s196 = ssub.s32 %s29, %s36
      %s197 = sor.u32 %s195, %s196
      %p198 = scmp.eq.s32.totalorder %s197, 0
      %s200 = sadd.s32 %s199, 1
      %s201 = scalar_select %p198, %s199, %s200
      %p204 = pneg %p198
      %p205 = scmp.eq.s32.totalorder %s21, 1
      %p206 = por %p204, %p205
      %p207 = scmp.ne.s32.totalorder %s199, %s202
      %p208 = scmp.eq.s32.totalorder %s21, 0
      %p209 = por %p207, %p208
      %p210 = scmp.ne.s32.totalorder %s199, %s202
      %p211 = scmp.eq.s32.totalorder %s26, 1
      %p212 = por %p210, %p211
      %p213 = scmp.ne.s32.totalorder %s202, %s203
      %p214 = scmp.eq.s32.totalorder %s26, 0
      %p215 = por %p213, %p214
      %p216 = scmp.ne.s32.totalorder %s202, %s203
      %p217 = scmp.eq.s32.totalorder %s27, 1
      %p218 = por %p216, %p217
      %p220 = scmp.ne.s32.totalorder %s203, %s219
      %p221 = scmp.eq.s32.totalorder %s27, 0
      %p222 = por %p220, %p221
      %p223 = scmp.le.s32.totalorder 1, %s21
      %p224 = scmp.lt.s32.totalorder %s21, 3
      %p225 = pnand %p223, %p224
      %p226 = pneg %p225
      // Predicated region
      $region9: #{tpu_custom_call.1} parent=5 // pred_check
        _
      $region10: #{tpu_custom_call.1} parent=5 // pred_check_branch
        %228 = sbr.rel (%p225) target = $region12
      $region11: #{tpu_custom_call.1} parent=5 // pred_region
        %s229 = ssub.s32 %s21, 1
        // Predicated region
        $region13: #{tpu_custom_call.1} parent=11 // pred_check
          %p230 = pneg %p82
        $region14: #{tpu_custom_call.1} parent=11 // pred_check_branch
          %232 = sbr.rel (%p230) target = $region16
        $region15: #{tpu_custom_call.1} parent=11 // pred_region
          _
        $region16: #{tpu_custom_call.1} parent=11 // pred_fallthru
          _
        // Predicated region
        $region17: #{tpu_custom_call.1} parent=11 // pred_check
          %p233 = pneg %p103
        $region18: #{tpu_custom_call.1} parent=11 // pred_check_branch
          %235 = sbr.rel (%p233) target = $region20
        $region19: #{tpu_custom_call.1} parent=11 // pred_region
          _
        $region20: #{tpu_custom_call.1} parent=11 // pred_fallthru
          _
        // Predicated region
        $region21: #{tpu_custom_call.1} parent=11 // pred_check
          %p236 = pneg %p124
        $region22: #{tpu_custom_call.1} parent=11 // pred_check_branch
          %238 = sbr.rel (%p236) target = $region24
        $region23: #{tpu_custom_call.1} parent=11 // pred_region
          _
        $region24: #{tpu_custom_call.1} parent=11 // pred_fallthru
          _
        // Predicated region
        $region25: #{tpu_custom_call.1} parent=11 // pred_check
          %p239 = pneg %p145
        $region26: #{tpu_custom_call.1} parent=11 // pred_check_branch
          %241 = sbr.rel (%p239) target = $region28
        $region27: #{tpu_custom_call.1} parent=11 // pred_region
          _
        $region28: #{tpu_custom_call.1} parent=11 // pred_fallthru
          _
        // Predicated region
        $region29: #{tpu_custom_call.1} parent=11 // pred_check
          %p242 = pneg %p166
        $region30: #{tpu_custom_call.1} parent=11 // pred_check_branch
          %244 = sbr.rel (%p242) target = $region32
        $region31: #{tpu_custom_call.1} parent=11 // pred_region
          _
        $region32: #{tpu_custom_call.1} parent=11 // pred_fallthru
          _
        // Predicated region
        $region33: #{tpu_custom_call.1} parent=11 // pred_check
          %p245 = pneg %p187
        $region34: #{tpu_custom_call.1} parent=11 // pred_check_branch
          %247 = sbr.rel (%p245) target = $region36
        $region35: #{tpu_custom_call.1} parent=11 // pred_region
          _
        $region36: #{tpu_custom_call.1} parent=11 // pred_fallthru
          _
      $region12: #{tpu_custom_call.1} parent=5 // pred_fallthru
        _
      %p248 = scmp.lt.s32.totalorder %s21, 2
      // Predicated region
      $region37: #{tpu_custom_call.1} parent=5 // pred_check
        %p249 = pneg %p248
      $region38: #{tpu_custom_call.1} parent=5 // pred_check_branch
        %251 = sbr.rel (%p249) target = $region40
      $region39: #{tpu_custom_call.1} parent=5 // pred_region
        // Predicated region
        $region41: #{tpu_custom_call.1} parent=39 // pred_check
          %p252 = pneg %p55
        $region42: #{tpu_custom_call.1} parent=39 // pred_check_branch
          %254 = sbr.rel (%p252) target = $region44
        $region43: #{tpu_custom_call.1} parent=39 // pred_region
          %s255 = sand.u32 %s45, 1
          %s256 = scalar_lea.sflag [#allocation4], %s255
          %s257 = sand.u32 %s45, 1
          %s258 = smul.addr %s257, 64
          %s259 = scalar_lea.vmem [#allocation3], %s258
          %s260 = smul.u32 2, %s29
          %262 = vsyncadd %s256, 0
          %s263 = smul.addr %s28, 8
          %s264 = sadd.s32 %s260, %s263
          %s265 = smul.addr %s264, 8
          %s266 = scalar_lea.hbm %s0, %s265
          %s267 = sshll.u32 %s266, 4
          %s268 = int_to_ptr.hbm [resolvable:$true] %s267
          %s269 = sshll.u32 %s259, 4
          %s270 = int_to_ptr.vmem [resolvable:$true] %s269
          %275 = dma.hbm_to_vmem [thread:$0]  %s268, 1024, %s270, %s256, 256, 256, 16
        $region44: #{tpu_custom_call.1} parent=39 // pred_fallthru
          _
      $region40: #{tpu_custom_call.1} parent=5 // pred_fallthru
        _
      %p276 = scmp.le.s32.totalorder 1, %s21
      %p277 = scmp.lt.s32.totalorder %s21, 3
      %p278 = pnand %p276, %p277
      %p279 = pneg %p278
      // Predicated region
      $region45: #{tpu_custom_call.1} parent=5 // pred_check
        _
      $region46: #{tpu_custom_call.1} parent=5 // pred_check_branch
        %281 = sbr.rel (%p278) target = $region48
      $region47: #{tpu_custom_call.1} parent=5 // pred_region
        %s282 = ssub.s32 %s21, 1
        %s283 = sand.u32 %s48, 1
        %s284 = scalar_lea.sflag [#allocation4], %s283
        %s285 = sand.u32 %s48, 1
        %s286 = smul.addr %s285, 64
        %s287 = scalar_lea.vmem [#allocation3], %s286
        // Predicated region
        $region49: #{tpu_custom_call.1} parent=47 // pred_check
          %p288 = pneg %p61
        $region50: #{tpu_custom_call.1} parent=47 // pred_check_branch
          %290 = sbr.rel (%p288) target = $region52
        $region51: #{tpu_custom_call.1} parent=47 // pred_region
          %292 = dma.done %s284, 1024
        $region52: #{tpu_custom_call.1} parent=47 // pred_fallthru
          _
        %s293 = sand.u32 %s48, 1
        %s294 = scalar_lea.sflag [#allocation4], %s293
        %s295 = sand.u32 %s48, 1
        %s296 = smul.addr %s295, 64
        %s297 = scalar_lea.vmem [#allocation3], %s296
        %p298 = pneg %p61
        %p299 = pneg %p58
        %p300 = pneg %p82
        %p301 = pneg %p79
        %p302 = pneg %p103
        %p303 = pneg %p100
        %p304 = pneg %p124
        %p305 = pneg %p121
        %p306 = pneg %p145
        %p307 = pneg %p142
        %p308 = pneg %p166
        %p309 = pneg %p163
        %p310 = pneg %p187
        %p311 = pneg %p184
        %p312 = pneg %p215
        %p313 = pneg %p212
        %s314 = sand.u32 %s202, 1
        %s315 = scalar_lea.sflag [#allocation5], %s314
        %s316 = sand.u32 %s202, 1
        %s317 = smul.addr %s316, 2
        %s318 = scalar_lea.vmem [#allocation6], %s317
        %s319 = smul.u32 2, %s31
        %s320 = smul.u32 2, %s31
        %v321 = vld [vmem:[%s287] sm:$0xff]
        %v322 = vld [vmem:[%s287 + $0x8] sm:$0xff]
        %v323 = vld [vmem:[%s287 + $0x10] sm:$0xff]
        %v324 = vld [vmem:[%s287 + $0x18] sm:$0xff]
        %v325 = vld [vmem:[%s287 + $0x20] sm:$0xff]
        %v326 = vld [vmem:[%s287 + $0x28] sm:$0xff]
        %v327 = vld [vmem:[%s287 + $0x30] sm:$0xff]
        %v328 = vld [vmem:[%s287 + $0x38] sm:$0xff]
        %v329 = vld [vmem:[%s1] sm:$0xff]
        %v330 = vld [vmem:[%s1 + $0x8] sm:$0xff]
        %v331 = vld [vmem:[%s2] sm:$0xff]
        %v332 = vld [vmem:[%s2 + $0x8] sm:$0xff]
        %334 = vset.pattern.permute.xlu0 0
        %335 = vperm.xlu0 %334, %v331
        %v336 = vpop.permute.xlu0 %335
        %339 = vset.pattern.permute.xlu0 0
        %340 = vperm.xlu0 %339, %v332
        %v341 = vpop.permute.xlu0 %340
        %vm343 = vcmask 261120
        %v345 = vsel %vm343, %v329, 0
        %v348 = vsel %vm343, %v330, 0
        %350 = vmatpush.msra.mxu0 0.0
        %351 = vmatpush.msra.mxu0 0.0
        %352 = vmatpush.msra.mxu0 0.0
        %353 = vmatpush.msra.mxu0 0.0
        %354 = vmatpush.msra.mxu0 0.0
        %355 = vmatpush.msra.mxu0 0.0
        %356 = vmatpush.msra.mxu0 0.0
        %357 = vmatpush.msra.mxu0 0.0
        %358 = vmatpush.msra.mxu0 0.0
        %359 = vmatpush.msra.mxu0 0.0
        %360 = vmatpush.msra.mxu0 0.0
        %361 = vmatpush.msra.mxu0 0.0
        %362 = vmatpush.msra.mxu0 %v327
        %363 = vmatpush.msra.mxu0 %v325
        %364 = vmatpush.msra.mxu0 %v323
        %365 = vmatpush.msra.mxu0 %v321
        %366 = vmatmul.f32.gmra.mxu0 %v345
        %v367 = vpop.f32.mrf.mxu0
        %v368 = vadd.f32 %v336, %v367
        %369 = vmatmul.f32.gmra.mxu0 %v348
        %v370 = vpop.f32.mrf.mxu0
        %v371 = vadd.f32 %v341, %v370
        %372 = vdwg.mxu0
        %373 = vmatpush.msra.mxu0 0.0
        %374 = vmatpush.msra.mxu0 0.0
        %375 = vmatpush.msra.mxu0 0.0
        %376 = vmatpush.msra.mxu0 0.0
        %377 = vmatpush.msra.mxu0 0.0
        %378 = vmatpush.msra.mxu0 0.0
        %379 = vmatpush.msra.mxu0 0.0
        %380 = vmatpush.msra.mxu0 0.0
        %381 = vmatpush.msra.mxu0 0.0
        %382 = vmatpush.msra.mxu0 0.0
        %383 = vmatpush.msra.mxu0 0.0
        %384 = vmatpush.msra.mxu0 0.0
        %385 = vmatpush.msra.mxu0 %v328
        %386 = vmatpush.msra.mxu0 %v326
        %387 = vmatpush.msra.mxu0 %v324
        %388 = vmatpush.msra.mxu0 %v322
        %389 = vmatmul.f32.gmra.mxu0 %v345
        %v390 = vpop.f32.mrf.mxu0
        %v391 = vadd.f32 %v336, %v390
        %392 = vmatmul.f32.gmra.mxu0 %v348
        %v393 = vpop.f32.mrf.mxu0
        %v394 = vadd.f32 %v341, %v393
        %395 = vdwg.mxu0
        %v396 = vmax.f32 %v368, 0.0
        %v397 = vmax.f32 %v391, 0.0
        %v398 = vmax.f32 %v371, 0.0
        %v399 = vmax.f32 %v394, 0.0
        %v400 = vld [vmem:[%s3] sm:$0xff]
        %v401 = vld [vmem:[%s4] sm:$0xff]
        %403 = vset.pattern.permute.xlu0 0
        %404 = vperm.xlu0 %403, %v401
        %v405 = vpop.permute.xlu0 %404
        %vm407 = vcmask 130048
        %v409 = vsel %vm407, %v400, 0
        %411 = vmatpush.msra.mxu0 0.0
        %412 = vmatpush.msra.mxu0 0.0
        %413 = vmatpush.msra.mxu0 0.0
        %414 = vmatpush.msra.mxu0 0.0
        %415 = vmatpush.msra.mxu0 0.0
        %416 = vmatpush.msra.mxu0 0.0
        %417 = vmatpush.msra.mxu0 0.0
        %418 = vmatpush.msra.mxu0 0.0
        %419 = vmatpush.msra.mxu0 0.0
        %420 = vmatpush.msra.mxu0 0.0
        %421 = vmatpush.msra.mxu0 0.0
        %422 = vmatpush.msra.mxu0 0.0
        %423 = vmatpush.msra.mxu0 0.0
        %424 = vmatpush.msra.mxu0 0.0
        %425 = vmatpush.msra.mxu0 %v398
        %426 = vmatpush.msra.mxu0 %v396
        %427 = vmatmul.f32.gmra.mxu0 %v409
        %v428 = vpop.f32.mrf.mxu0
        %v429 = vadd.f32 %v405, %v428
        %430 = vdwg.mxu0
        %431 = vmatpush.msra.mxu0 0.0
        %432 = vmatpush.msra.mxu0 0.0
        %433 = vmatpush.msra.mxu0 0.0
        %434 = vmatpush.msra.mxu0 0.0
        %435 = vmatpush.msra.mxu0 0.0
        %436 = vmatpush.msra.mxu0 0.0
        %437 = vmatpush.msra.mxu0 0.0
        %438 = vmatpush.msra.mxu0 0.0
        %439 = vmatpush.msra.mxu0 0.0
        %440 = vmatpush.msra.mxu0 0.0
        %441 = vmatpush.msra.mxu0 0.0
        %442 = vmatpush.msra.mxu0 0.0
        %443 = vmatpush.msra.mxu0 0.0
        %444 = vmatpush.msra.mxu0 0.0
        %445 = vmatpush.msra.mxu0 %v399
        %446 = vmatpush.msra.mxu0 %v397
        %447 = vmatmul.f32.gmra.mxu0 %v409
        %v448 = vpop.f32.mrf.mxu0
        %v449 = vadd.f32 %v405, %v448
        %450 = vdwg.mxu0
        %v451 = vmax.f32 %v429, 0.0
        %v452 = vmax.f32 %v449, 0.0
        %v453 = vld [vmem:[%s5] sm:$0x1]
        %v454 = vld [vmem:[#allocation2] sm:$0x1]
        %v455 = vperm.slane %v453, 0
        %v456 = vlaneseq
        %v457 = vshrl.u32 %v456, 7
        %459 = vset.pattern.permute.xlu0 %v457
        %460 = vperm.xlu0 %459, %v455
        %v461 = vpop.permute.xlu0 %460
        %v462 = vmul.f32 %v461, %v451
        %v463 = vmul.f32 %v461, %v452
        %v464 = vrot.slane %v462, 4
        %v465 = vadd.f32 %v462, %v464
        %v466 = vrot.slane %v465, 2
        %v467 = vadd.f32 %v465, %v466
        %v468 = vrot.slane %v467, 1
        %v469 = vadd.f32 %v467, %v468
        %v470 = vrot.slane %v463, 4
        %v471 = vadd.f32 %v463, %v470
        %v472 = vrot.slane %v471, 2
        %v473 = vadd.f32 %v471, %v472
        %v474 = vrot.slane %v473, 1
        %v475 = vadd.f32 %v473, %v474
        %477 = vset.pattern.permute.xlu0 0
        %478 = vperm.xlu0 %477, %v454
        %v479 = vpop.permute.xlu0 %478
        %v481 = vperm.slane %v479, 0
        %v482 = vadd.f32 %v469, %v481
        %v483 = vadd.f32 %v475, %v481
        %v484 = vxor.u32 %v482, 2147483648
        %v485 = vxor.u32 %v483, 2147483648
        %v486 = vmul.f32 %v484, 1.442695
        %v487 = vpow.pop %v486
        %v488 = vmul.f32 %v485, 1.442695
        %v489 = vpow.pop %v488
        %v490 = vadd.f32 %v487, 1.0
        %v491 = vadd.f32 %v489, 1.0
        %v492 = vrcp.pop %v490
        %v493 = vmul.f32 %v490, %v492
        %v494 = vsub.f32 1.0, %v493
        %v495 = vmul.f32 %v492, %v494
        %v496 = vadd.f32 %v492, %v495
        %vm497 = vweird.f32 %v490
        %vm498 = vweird.f32 %v492
        %vm499 = vmor %vm497, %vm498
        %v500 = vsel %vm499, %v492, %v496
        %v501 = vand.u32 2147483647, %v490
        %vm502 = vcmp.eq.f32.partialorder %v501, 8.507059e+37
        %v503 = vand.u32 %v490, 2147483648
        %v504 = vor.u32 1.1754944e-38, %v503
        %v505 = vsel %vm502, %v504, %v500
        %v506 = vmul.f32 1.0, %v505
        %v507 = vrcp.pop %v491
        %v508 = vmul.f32 %v491, %v507
        %v509 = vsub.f32 1.0, %v508
        %v510 = vmul.f32 %v507, %v509
        %v511 = vadd.f32 %v507, %v510
        %vm512 = vweird.f32 %v491
        %vm513 = vweird.f32 %v507
        %vm514 = vmor %vm512, %vm513
        %v515 = vsel %vm514, %v507, %v511
        %v516 = vand.u32 2147483647, %v491
        %vm517 = vcmp.eq.f32.partialorder %v516, 8.507059e+37
        %v518 = vand.u32 %v491, 2147483648
        %v519 = vor.u32 1.1754944e-38, %v518
        %v520 = vsel %vm517, %v519, %v515
        %v521 = vmul.f32 1.0, %v520
        %v524 = vrot.slane %v521, 7
        %vm525 = vcmask 1040384
        %v526 = vsel %vm525, %v506, %v524
        %v528 = vlaneseq
        %vm529 = vcmp.ge.s32.totalorder %v528, 0
        %vm530 = vcmp.lt.s32.totalorder %v528, 256
        %vm531 = vmand %vm529, %vm530
        %532 = vst.msk [vmem:[%s318] sm:$0x3] %vm531, %v526
        %s533 = sand.u32 %s202, 1
        %s534 = scalar_lea.sflag [#allocation5], %s533
        %s535 = sand.u32 %s202, 1
        %s536 = smul.addr %s535, 2
        %s537 = scalar_lea.vmem [#allocation6], %s536
        // Predicated region
        $region53: #{tpu_custom_call.1} parent=47 // pred_check
          %p538 = pneg %p212
        $region54: #{tpu_custom_call.1} parent=47 // pred_check_branch
          %540 = sbr.rel (%p538) target = $region56
        $region55: #{tpu_custom_call.1} parent=47 // pred_region
          %s541 = smul.u32 2, %s31
          %543 = vsyncadd %s534, 0
          %s544 = smul.addr %s30, 2
          %s545 = sadd.s32 %s541, %s544
          %s546 = scalar_lea.hbm %s7, %s545
          %s548 = sshll.u32 %s537, 4
          %s549 = int_to_ptr.vmem [resolvable:$true] %s548
          %s550 = sshll.u32 %s546, 4
          %s551 = int_to_ptr.hbm [resolvable:$true] %s550
          %553 = dma.vmem_to_hbm [thread:$0]  %s549, 32, %s551, %s534
        $region56: #{tpu_custom_call.1} parent=47 // pred_fallthru
          _
      $region48: #{tpu_custom_call.1} parent=5 // pred_fallthru
        _
      %p554 = scmp.le.s32.totalorder 2, %s21
      // Predicated region
      $region57: #{tpu_custom_call.1} parent=5 // pred_check
        %p555 = pneg %p554
      $region58: #{tpu_custom_call.1} parent=5 // pred_check_branch
        %557 = sbr.rel (%p555) target = $region60
      $region59: #{tpu_custom_call.1} parent=5 // pred_region
        %s558 = ssub.s32 %s21, 2
        // Predicated region
        $region61: #{tpu_custom_call.1} parent=59 // pred_check
          %p559 = pneg %p218
        $region62: #{tpu_custom_call.1} parent=59 // pred_check_branch
          %561 = sbr.rel (%p559) target = $region64
        $region63: #{tpu_custom_call.1} parent=59 // pred_region
          %s562 = sand.u32 %s203, 1
          %s563 = scalar_lea.sflag [#allocation5], %s562
          %s564 = sand.u32 %s203, 1
          %s565 = smul.addr %s564, 2
          %s566 = scalar_lea.vmem [#allocation6], %s565
          %568 = dma.done %s563, 32
        $region64: #{tpu_custom_call.1} parent=59 // pred_fallthru
          _
      $region60: #{tpu_custom_call.1} parent=5 // pred_fallthru
        _
    $region6: #{tpu_custom_call.1} parent=1 // loop_footer
      %s25 = sadd.s32 1, %s21
    $region7: #{tpu_custom_call.1} parent=1 // loop_footer_branch
      %20 = sbr.rel target = $region3
    $region8: #{tpu_custom_call.1} parent=1 // loop_exit
      _
    %569 = vsyncpa [#allocation4], 1
    %s570 = scalar_lea.sflag [#allocation4], 1
    %571 = vsyncpa %s570, 1
    %572 = vsyncpa [#allocation5], 1
    %s573 = scalar_lea.sflag [#allocation5], 1
    %574 = vsyncpa %s573, 1

</llo_original>
